<compile_context>
chip_gen: v6e
topology: v6e:2x2x1
jax: 0.10.0
libtpu: 0.0.40
codegen_flags: <defaults>
</compile_context>

<pallas_src>
import math

import jax
import jax.numpy as jnp
from jax import lax
from jax.experimental import pallas as pl
from jax.experimental.pallas import tpu as pltpu

LANES = 128
_LN2 = 0.6931471805599453

# softplus(-p) = log1p(exp(-p)) for p in [0, 1] via the ln-cosh even series:
#   ln2 - p/2 + p^2/8 - p^4/192 + p^6/2880 - 17 p^8/645120 + 31 p^10/14515200
# Max abs error ~4e-7 on [0, 1]; evaluated entirely on the VPU.
_C1 = 1.0 / 8.0
_C2 = -1.0 / 192.0
_C3 = 1.0 / 2880.0
_C4 = -17.0 / 645120.0
_C5 = 31.0 / 14515200.0


def _cdiv(a, b):
    return -(-a // b)


def _round_up(a, b):
    return _cdiv(a, b) * b


def _softplus_neg_poly(p):
    """log1p(exp(-p)) for p in [0, 1] (VPU-only polynomial)."""
    u = p * p
    g = ((((_C5 * u + _C4) * u + _C3) * u + _C2) * u + _C1) * u
    return (_LN2 - 0.5 * p) + g


def _chip_config():
    """(max block rows, preferred outer split) per TPU generation."""
    kind = ""
    try:
        kind = jax.devices()[0].device_kind.lower()
    except Exception:
        pass
    if "v7" in kind or "7x" in kind:
        return 8192, 2   # 2 TensorCores, 3.2 TB/s HBM: bigger blocks + 2-way split
    return 4096, 1       # v5e / v6e / unknown: single TensorCore


def dice_bce_loss(inputs, targets, smooth=1.0):
    """Pallas implementation of DiceBCELoss.forward(inputs, targets, smooth)."""
    x = jnp.ravel(inputs)
    t = jnp.ravel(targets)
    n = x.shape[0]

    max_rows, g_outer_pref = _chip_config()

    rows = _cdiv(n, LANES)
    pad_l = rows * LANES - n   # lane remainder only (< 128); never whole tiles
    if pad_l:
        # sigmoid(-1e4) == 0 exactly, so padded elements contribute exactly
        # ln(2) to the softplus sum and nothing to the dice sums.
        x = jnp.pad(x, (0, pad_l), constant_values=-1e4)
        t = jnp.pad(t, (0, pad_l), constant_values=0)
    x = x.reshape(rows, LANES)
    t = t.reshape(rows, LANES)

    # Sublane multiple for the narrowest streamed dtype (f32->8, bf16->16, int8->32).
    sub = max(32 // x.dtype.itemsize, 32 // t.dtype.itemsize, 8)

    if rows <= max_rows:
        block_rows = rows          # full extent: exempt from (8,128) divisibility
        g_outer, g_inner = 1, 1
    else:
        block_rows = _round_up(max_rows, sub)
        n_blocks = _cdiv(rows, block_rows)
        g_outer = g_outer_pref if n_blocks >= 2 else 1
        g_inner = _cdiv(n_blocks, g_outer)
    n_blocks = _cdiv(rows, block_rows)

    def kernel(x_ref, t_ref, part_ref):
        """part_ref rows: 0=sum(p*t), 1=sum(p), 2=sum(t), 3=sum(softplus(-p))."""
        o = pl.program_id(0)
        i = pl.program_id(1)

        @pl.when(i == 0)
        def _():
            part_ref[...] = jnp.zeros_like(part_ref)

        block_start = (o * g_inner + i) * block_rows  # un-clamped global row offset

        def accumulate(masked):
            xb = x_ref[...].astype(jnp.float32)
            tb = t_ref[...].astype(jnp.float32)
            p = jax.nn.sigmoid(xb)                    # only EUP op per element
            if masked:
                row = lax.broadcasted_iota(jnp.int32, p.shape, 0) + block_start
                valid = row < rows
                p = jnp.where(valid, p, 0.0)          # where(): kills NaN garbage
                tb = jnp.where(valid, tb, 0.0)
            pt = p * tb
            sp = _softplus_neg_poly(p)
            if masked:
                sp = jnp.where(valid, sp, 0.0)
            # Sublane-only reductions; the 128-lane axis stays live in the
            # VMEM-resident output block (output-as-accumulator).
            part_ref[0:1, :] += jnp.sum(pt, axis=0, keepdims=True)
            part_ref[1:2, :] += jnp.sum(p, axis=0, keepdims=True)
            part_ref[2:3, :] += jnp.sum(tb, axis=0, keepdims=True)
            part_ref[3:4, :] += jnp.sum(sp, axis=0, keepdims=True)

        needs_mask = block_start + block_rows > rows

        @pl.when(needs_mask)
        def _():
            accumulate(True)

        @pl.when(jnp.logical_not(needs_mask))
        def _():
            accumulate(False)

    if g_outer * g_inner == n_blocks:
        def in_map(o, i):
            return (o * g_inner + i, 0)
    else:
        # Grid over-covers the row space: clamp the block index so no DMA ever
        # lands fully out of bounds; the in-kernel row mask (computed from the
        # un-clamped offset) zeroes those blocks' contributions.
        def in_map(o, i):
            return (jnp.minimum(o * g_inner + i, n_blocks - 1), 0)

    # Double-buffered native-dtype inputs; raise the scoped-VMEM limit above
    # v5e's 16 MiB default when the blocks outgrow it.
    per_step_bytes = block_rows * LANES * (x.dtype.itemsize + t.dtype.itemsize)
    vmem_limit = min(int(2 * per_step_bytes + (8 << 20)), 48 << 20)
    vmem_limit = max(vmem_limit, 16 << 20)

    parts = pl.pallas_call(
        kernel,
        out_shape=jax.ShapeDtypeStruct((g_outer * 8, LANES), jnp.float32),
        grid_spec=pltpu.PrefetchScalarGridSpec(
            num_scalar_prefetch=0,
            grid=(g_outer, g_inner),
            in_specs=[
                pl.BlockSpec((block_rows, LANES), in_map),
                pl.BlockSpec((block_rows, LANES), in_map),
            ],
            out_specs=pl.BlockSpec((8, LANES), lambda o, i: (o, 0)),
        ),
        compiler_params=pltpu.CompilerParams(
            dimension_semantics=("parallel", "arbitrary"),
            vmem_limit_bytes=vmem_limit,
        ),
    )(x, t)

    # Final cross-lane reductions + loss math on a tiny array.
    parts = parts.reshape(g_outer, 8, LANES)
    intersection = jnp.sum(parts[:, 0, :])
    sum_p = jnp.sum(parts[:, 1, :])
    sum_t = jnp.sum(parts[:, 2, :])
    # Lane-remainder pad elements have p == 0 exactly -> each added exactly
    # ln(2) to the softplus sum and nothing else; subtract the known constant.
    sp_sum = jnp.sum(parts[:, 3, :]) - jnp.float32(pad_l * math.log(2.0))

    smooth = jnp.float32(smooth)
    bce = (sum_p - intersection + sp_sum) / jnp.float32(n)
    dice_loss = 1.0 - (2.0 * intersection + smooth) / (sum_p + sum_t + smooth)
    return bce + dice_loss


def dice_bce_loss_ref(inputs, targets, smooth=1.0):
    """Pure-JAX reference matching the PyTorch module exactly."""
    p = jax.nn.sigmoid(jnp.ravel(inputs).astype(jnp.float32))
    t = jnp.ravel(targets).astype(jnp.float32)
    intersection = jnp.sum(p * t)
    dice_loss = 1.0 - (2.0 * intersection + smooth) / (jnp.sum(p) + jnp.sum(t) + smooth)
    # BCE-with-logits applied to p (matches the reassignment quirk in the module)
    bce = jnp.mean(jnp.maximum(p, 0.0) - p * t + jnp.log1p(jnp.exp(-jnp.abs(p))))
    return bce + dice_loss


if __name__ == "__main__":
    key = jax.random.PRNGKey(0)
    k1, k2, k3, k4 = jax.random.split(key, 4)

    # NCHW-shaped logits and binary targets, as a segmentation loss would see.
    x = jax.random.normal(k1, (2, 4, 16, 16), dtype=jnp.float32)
    t = (jax.random.uniform(k2, (2, 4, 16, 16)) > 0.5).astype(jnp.float32)
    loss = jax.block_until_ready(dice_bce_loss(x, t))
    ref = dice_bce_loss_ref(x, t)
    assert jnp.allclose(loss, ref, rtol=1e-5, atol=1e-5), (loss, ref)

    # Awkward (non-multiple-of-128) size exercising the lane-remainder path.
    x2 = jax.random.normal(k3, (3, 5, 7, 11), dtype=jnp.float32)
    t2 = (jax.random.uniform(k4, (3, 5, 7, 11)) > 0.5).astype(jnp.float32)
    loss2 = jax.block_until_ready(dice_bce_loss(x2, t2))
    ref2 = dice_bce_loss_ref(x2, t2)
    assert jnp.allclose(loss2, ref2, rtol=1e-5, atol=1e-5), (loss2, ref2)

    print("KERNEL_OK")
</pallas_src>

<mosaic_0001>
module attributes {stable_mosaic.version = 11 : i64} {
  func.func @kernel(%arg0: i32, %arg1: i32, %arg2: memref<16x128xf32, #tpu.memory_space<vmem>>, %arg3: memref<16x128xf32, #tpu.memory_space<vmem>>, %arg4: memref<8x128xf32, #tpu.memory_space<vmem>>) attributes {dimension_semantics = [#tpu.dimension_semantics<parallel>, #tpu.dimension_semantics<arbitrary>], iteration_bounds = array<i64: 1, 1>, scalar_prefetch = 0 : i64, scratch_operands = 0 : i64, tpu.core_type = #tpu.core_type<tc>, window_params = [{transform_indices = @transform_0, window_bounds = array<i64: 16, 128>}, {transform_indices = @transform_1, window_bounds = array<i64: 16, 128>}, {transform_indices = @transform_2, window_bounds = array<i64: 8, 128>}]} {
    %c0_i32 = arith.constant 0 : i32
    %0 = arith.cmpi eq, %arg1, %c0_i32 : i32
    %1 = arith.extui %0 : i1 to i32
    %c0_i32_0 = arith.constant 0 : i32
    %2 = arith.cmpi ne, %1, %c0_i32_0 : i32
    scf.if %2 {
      %cst = arith.constant 0.000000e+00 : f32
      %13 = vector.broadcast %cst : f32 to vector<8x128xf32>
      %c0 = arith.constant 0 : index
      %c0_5 = arith.constant 0 : index
      %14 = vector.load %arg4[%c0, %c0_5] : memref<8x128xf32, #tpu.memory_space<vmem>>, vector<8x128xf32>
      tpu.vector_store %arg4[%c0, %c0_5], %13 {strides = array<i32>} : memref<8x128xf32, #tpu.memory_space<vmem>>, vector<8x128xf32>,
    } else {
    }
    %c1_i32 = arith.constant 1 : i32
    %3 = arith.muli %arg0, %c1_i32 : i32
    %4 = arith.addi %3, %arg1 : i32
    %c16_i32 = arith.constant 16 : i32
    %5 = arith.muli %4, %c16_i32 : i32
    %c16_i32_1 = arith.constant 16 : i32
    %6 = arith.addi %5, %c16_i32_1 : i32
    %c16_i32_2 = arith.constant 16 : i32
    %7 = arith.cmpi sgt, %6, %c16_i32_2 : i32
    %8 = arith.extui %7 : i1 to i32
    %c0_i32_3 = arith.constant 0 : i32
    %9 = arith.cmpi ne, %8, %c0_i32_3 : i32
    scf.if %9 {
      %c0 = arith.constant 0 : index
      %c0_5 = arith.constant 0 : index
      %13 = vector.load %arg2[%c0, %c0_5] : memref<16x128xf32, #tpu.memory_space<vmem>>, vector<16x128xf32>
      %c0_6 = arith.constant 0 : index
      %c0_7 = arith.constant 0 : index
      %14 = vector.load %arg3[%c0_6, %c0_7] : memref<16x128xf32, #tpu.memory_space<vmem>>, vector<16x128xf32>
      %15 = arith.negf %13 : vector<16x128xf32>
      %16 = math.exp %15 : vector<16x128xf32>
      %cst = arith.constant 1.000000e+00 : f32
      %17 = vector.broadcast %cst : f32 to vector<16x128xf32>
      %18 = arith.addf %17, %16 : vector<16x128xf32>
      %19 = arith.divf %17, %18 : vector<16x128xf32>
      %20 = tpu.iota {dimensions = array<i32: 0>} : vector<16x128xi32>
      %21 = vector.broadcast %5 : i32 to vector<16x128xi32>
      %22 = arith.addi %20, %21 : vector<16x128xi32>
      %c16_i32_8 = arith.constant 16 : i32
      %23 = vector.broadcast %c16_i32_8 : i32 to vector<16x128xi32>
      %24 = arith.cmpi slt, %22, %23 : vector<16x128xi32>
      %cst_9 = arith.constant 0.000000e+00 : f32
      %25 = vector.broadcast %cst_9 : f32 to vector<16x128xf32>
      %26 = arith.select %24, %19, %25 : vector<16x128xi1>, vector<16x128xf32>
      %cst_10 = arith.constant 0.000000e+00 : f32
      %27 = vector.broadcast %cst_10 : f32 to vector<16x128xf32>
      %28 = arith.select %24, %14, %27 : vector<16x128xi1>, vector<16x128xf32>
      %29 = arith.mulf %26, %28 : vector<16x128xf32>
      %30 = arith.mulf %26, %26 : vector<16x128xf32>
      %cst_11 = arith.constant 2.13569228E-6 : f32
      %31 = vector.broadcast %cst_11 : f32 to vector<16x128xf32>
      %32 = arith.mulf %31, %30 : vector<16x128xf32>
      %cst_12 = arith.constant -2.63516868E-5 : f32
      %33 = vector.broadcast %cst_12 : f32 to vector<16x128xf32>
      %34 = arith.addf %32, %33 : vector<16x128xf32>
      %35 = arith.mulf %34, %30 : vector<16x128xf32>
      %cst_13 = arith.constant 3.47222231E-4 : f32
      %36 = vector.broadcast %cst_13 : f32 to vector<16x128xf32>
      %37 = arith.addf %35, %36 : vector<16x128xf32>
      %38 = arith.mulf %37, %30 : vector<16x128xf32>
      %cst_14 = arith.constant -0.00520833349 : f32
      %39 = vector.broadcast %cst_14 : f32 to vector<16x128xf32>
      %40 = arith.addf %38, %39 : vector<16x128xf32>
      %41 = arith.mulf %40, %30 : vector<16x128xf32>
      %cst_15 = arith.constant 1.250000e-01 : f32
      %42 = vector.broadcast %cst_15 : f32 to vector<16x128xf32>
      %43 = arith.addf %41, %42 : vector<16x128xf32>
      %44 = arith.mulf %43, %30 : vector<16x128xf32>
      %cst_16 = arith.constant 5.000000e-01 : f32
      %45 = vector.broadcast %cst_16 : f32 to vector<16x128xf32>
      %46 = arith.mulf %45, %26 : vector<16x128xf32>
      %cst_17 = arith.constant 0.693147182 : f32
      %47 = vector.broadcast %cst_17 : f32 to vector<16x128xf32>
      %48 = arith.subf %47, %46 : vector<16x128xf32>
      %49 = arith.addf %48, %44 : vector<16x128xf32>
      %cst_18 = arith.constant 0.000000e+00 : f32
      %50 = vector.broadcast %cst_18 : f32 to vector<16x128xf32>
      %51 = arith.select %24, %49, %50 : vector<16x128xi1>, vector<16x128xf32>
      %c0_19 = arith.constant 0 : index
      %c0_20 = arith.constant 0 : index
      %52 = vector.load %arg4[%c0_19, %c0_20] : memref<8x128xf32, #tpu.memory_space<vmem>>, vector<1x128xf32>
      %cst_21 = arith.constant dense<0.000000e+00> : vector<128xf32>
      %53 = vector.multi_reduction <add>, %29, %cst_21 [0] : vector<16x128xf32> to vector<128xf32>
      %54 = vector.shape_cast %53 : vector<128xf32> to vector<1x128xf32>
      %55 = arith.addf %52, %54 : vector<1x128xf32>
      %c0_22 = arith.constant 0 : index
      %c0_23 = arith.constant 0 : index
      %56 = vector.load %arg4[%c0_22, %c0_23] : memref<8x128xf32, #tpu.memory_space<vmem>>, vector<1x128xf32>
      tpu.vector_store %arg4[%c0_22, %c0_23], %55 {strides = array<i32>} : memref<8x128xf32, #tpu.memory_space<vmem>>, vector<1x128xf32>,
      %c1 = arith.constant 1 : index
      %c0_24 = arith.constant 0 : index
      %57 = vector.load %arg4[%c1, %c0_24] : memref<8x128xf32, #tpu.memory_space<vmem>>, vector<1x128xf32>
      %cst_25 = arith.constant dense<0.000000e+00> : vector<128xf32>
      %58 = vector.multi_reduction <add>, %26, %cst_25 [0] : vector<16x128xf32> to vector<128xf32>
      %59 = vector.shape_cast %58 : vector<128xf32> to vector<1x128xf32>
      %60 = arith.addf %57, %59 : vector<1x128xf32>
      %c1_26 = arith.constant 1 : index
      %c0_27 = arith.constant 0 : index
      %61 = vector.load %arg4[%c1_26, %c0_27] : memref<8x128xf32, #tpu.memory_space<vmem>>, vector<1x128xf32>
      tpu.vector_store %arg4[%c1_26, %c0_27], %60 {strides = array<i32>} : memref<8x128xf32, #tpu.memory_space<vmem>>, vector<1x128xf32>,
      %c2 = arith.constant 2 : index
      %c0_28 = arith.constant 0 : index
      %62 = vector.load %arg4[%c2, %c0_28] : memref<8x128xf32, #tpu.memory_space<vmem>>, vector<1x128xf32>
      %cst_29 = arith.constant dense<0.000000e+00> : vector<128xf32>
      %63 = vector.multi_reduction <add>, %28, %cst_29 [0] : vector<16x128xf32> to vector<128xf32>
      %64 = vector.shape_cast %63 : vector<128xf32> to vector<1x128xf32>
      %65 = arith.addf %62, %64 : vector<1x128xf32>
      %c2_30 = arith.constant 2 : index
      %c0_31 = arith.constant 0 : index
      %66 = vector.load %arg4[%c2_30, %c0_31] : memref<8x128xf32, #tpu.memory_space<vmem>>, vector<1x128xf32>
      tpu.vector_store %arg4[%c2_30, %c0_31], %65 {strides = array<i32>} : memref<8x128xf32, #tpu.memory_space<vmem>>, vector<1x128xf32>,
      %c3 = arith.constant 3 : index
      %c0_32 = arith.constant 0 : index
      %67 = vector.load %arg4[%c3, %c0_32] : memref<8x128xf32, #tpu.memory_space<vmem>>, vector<1x128xf32>
      %cst_33 = arith.constant dense<0.000000e+00> : vector<128xf32>
      %68 = vector.multi_reduction <add>, %51, %cst_33 [0] : vector<16x128xf32> to vector<128xf32>
      %69 = vector.shape_cast %68 : vector<128xf32> to vector<1x128xf32>
      %70 = arith.addf %67, %69 : vector<1x128xf32>
      %c3_34 = arith.constant 3 : index
      %c0_35 = arith.constant 0 : index
      %71 = vector.load %arg4[%c3_34, %c0_35] : memref<8x128xf32, #tpu.memory_space<vmem>>, vector<1x128xf32>
      tpu.vector_store %arg4[%c3_34, %c0_35], %70 {strides = array<i32>} : memref<8x128xf32, #tpu.memory_space<vmem>>, vector<1x128xf32>,
    } else {
    }
    %true = arith.constant true
    %10 = arith.xori %7, %true : i1
    %11 = arith.extui %10 : i1 to i32
    %c0_i32_4 = arith.constant 0 : i32
    %12 = arith.cmpi ne, %11, %c0_i32_4 : i32
    scf.if %12 {
      %c0 = arith.constant 0 : index
      %c0_5 = arith.constant 0 : index
      %13 = vector.load %arg2[%c0, %c0_5] : memref<16x128xf32, #tpu.memory_space<vmem>>, vector<16x128xf32>
      %c0_6 = arith.constant 0 : index
      %c0_7 = arith.constant 0 : index
      %14 = vector.load %arg3[%c0_6, %c0_7] : memref<16x128xf32, #tpu.memory_space<vmem>>, vector<16x128xf32>
      %15 = arith.negf %13 : vector<16x128xf32>
      %16 = math.exp %15 : vector<16x128xf32>
      %cst = arith.constant 1.000000e+00 : f32
      %17 = vector.broadcast %cst : f32 to vector<16x128xf32>
      %18 = arith.addf %17, %16 : vector<16x128xf32>
      %19 = arith.divf %17, %18 : vector<16x128xf32>
      %20 = arith.mulf %19, %14 : vector<16x128xf32>
      %21 = arith.mulf %19, %19 : vector<16x128xf32>
      %cst_8 = arith.constant 2.13569228E-6 : f32
      %22 = vector.broadcast %cst_8 : f32 to vector<16x128xf32>
      %23 = arith.mulf %22, %21 : vector<16x128xf32>
      %cst_9 = arith.constant -2.63516868E-5 : f32
      %24 = vector.broadcast %cst_9 : f32 to vector<16x128xf32>
      %25 = arith.addf %23, %24 : vector<16x128xf32>
      %26 = arith.mulf %25, %21 : vector<16x128xf32>
      %cst_10 = arith.constant 3.47222231E-4 : f32
      %27 = vector.broadcast %cst_10 : f32 to vector<16x128xf32>
      %28 = arith.addf %26, %27 : vector<16x128xf32>
      %29 = arith.mulf %28, %21 : vector<16x128xf32>
      %cst_11 = arith.constant -0.00520833349 : f32
      %30 = vector.broadcast %cst_11 : f32 to vector<16x128xf32>
      %31 = arith.addf %29, %30 : vector<16x128xf32>
      %32 = arith.mulf %31, %21 : vector<16x128xf32>
      %cst_12 = arith.constant 1.250000e-01 : f32
      %33 = vector.broadcast %cst_12 : f32 to vector<16x128xf32>
      %34 = arith.addf %32, %33 : vector<16x128xf32>
      %35 = arith.mulf %34, %21 : vector<16x128xf32>
      %cst_13 = arith.constant 5.000000e-01 : f32
      %36 = vector.broadcast %cst_13 : f32 to vector<16x128xf32>
      %37 = arith.mulf %36, %19 : vector<16x128xf32>
      %cst_14 = arith.constant 0.693147182 : f32
      %38 = vector.broadcast %cst_14 : f32 to vector<16x128xf32>
      %39 = arith.subf %38, %37 : vector<16x128xf32>
      %40 = arith.addf %39, %35 : vector<16x128xf32>
      %c0_15 = arith.constant 0 : index
      %c0_16 = arith.constant 0 : index
      %41 = vector.load %arg4[%c0_15, %c0_16] : memref<8x128xf32, #tpu.memory_space<vmem>>, vector<1x128xf32>
      %cst_17 = arith.constant dense<0.000000e+00> : vector<128xf32>
      %42 = vector.multi_reduction <add>, %20, %cst_17 [0] : vector<16x128xf32> to vector<128xf32>
      %43 = vector.shape_cast %42 : vector<128xf32> to vector<1x128xf32>
      %44 = arith.addf %41, %43 : vector<1x128xf32>
      %c0_18 = arith.constant 0 : index
      %c0_19 = arith.constant 0 : index
      %45 = vector.load %arg4[%c0_18, %c0_19] : memref<8x128xf32, #tpu.memory_space<vmem>>, vector<1x128xf32>
      tpu.vector_store %arg4[%c0_18, %c0_19], %44 {strides = array<i32>} : memref<8x128xf32, #tpu.memory_space<vmem>>, vector<1x128xf32>,
      %c1 = arith.constant 1 : index
      %c0_20 = arith.constant 0 : index
      %46 = vector.load %arg4[%c1, %c0_20] : memref<8x128xf32, #tpu.memory_space<vmem>>, vector<1x128xf32>
      %cst_21 = arith.constant dense<0.000000e+00> : vector<128xf32>
      %47 = vector.multi_reduction <add>, %19, %cst_21 [0] : vector<16x128xf32> to vector<128xf32>
      %48 = vector.shape_cast %47 : vector<128xf32> to vector<1x128xf32>
      %49 = arith.addf %46, %48 : vector<1x128xf32>
      %c1_22 = arith.constant 1 : index
      %c0_23 = arith.constant 0 : index
      %50 = vector.load %arg4[%c1_22, %c0_23] : memref<8x128xf32, #tpu.memory_space<vmem>>, vector<1x128xf32>
      tpu.vector_store %arg4[%c1_22, %c0_23], %49 {strides = array<i32>} : memref<8x128xf32, #tpu.memory_space<vmem>>, vector<1x128xf32>,
      %c2 = arith.constant 2 : index
      %c0_24 = arith.constant 0 : index
      %51 = vector.load %arg4[%c2, %c0_24] : memref<8x128xf32, #tpu.memory_space<vmem>>, vector<1x128xf32>
      %cst_25 = arith.constant dense<0.000000e+00> : vector<128xf32>
      %52 = vector.multi_reduction <add>, %14, %cst_25 [0] : vector<16x128xf32> to vector<128xf32>
      %53 = vector.shape_cast %52 : vector<128xf32> to vector<1x128xf32>
      %54 = arith.addf %51, %53 : vector<1x128xf32>
      %c2_26 = arith.constant 2 : index
      %c0_27 = arith.constant 0 : index
      %55 = vector.load %arg4[%c2_26, %c0_27] : memref<8x128xf32, #tpu.memory_space<vmem>>, vector<1x128xf32>
      tpu.vector_store %arg4[%c2_26, %c0_27], %54 {strides = array<i32>} : memref<8x128xf32, #tpu.memory_space<vmem>>, vector<1x128xf32>,
      %c3 = arith.constant 3 : index
      %c0_28 = arith.constant 0 : index
      %56 = vector.load %arg4[%c3, %c0_28] : memref<8x128xf32, #tpu.memory_space<vmem>>, vector<1x128xf32>
      %cst_29 = arith.constant dense<0.000000e+00> : vector<128xf32>
      %57 = vector.multi_reduction <add>, %40, %cst_29 [0] : vector<16x128xf32> to vector<128xf32>
      %58 = vector.shape_cast %57 : vector<128xf32> to vector<1x128xf32>
      %59 = arith.addf %56, %58 : vector<1x128xf32>
      %c3_30 = arith.constant 3 : index
      %c0_31 = arith.constant 0 : index
      %60 = vector.load %arg4[%c3_30, %c0_31] : memref<8x128xf32, #tpu.memory_space<vmem>>, vector<1x128xf32>
      tpu.vector_store %arg4[%c3_30, %c0_31], %59 {strides = array<i32>} : memref<8x128xf32, #tpu.memory_space<vmem>>, vector<1x128xf32>,
    } else {
    }
    return
  }
  func.func @transform_0(%arg0: i32, %arg1: i32) -> (i32, i32) {
    %c1_i32 = arith.constant 1 : i32
    %0 = arith.muli %arg0, %c1_i32 : i32
    %1 = arith.addi %0, %arg1 : i32
    %c0_i32 = arith.constant 0 : i32
    %c0_i32_0 = arith.constant 0 : i32
    return %1, %c0_i32 : i32, i32
  }
  func.func @transform_1(%arg0: i32, %arg1: i32) -> (i32, i32) {
    %c1_i32 = arith.constant 1 : i32
    %0 = arith.muli %arg0, %c1_i32 : i32
    %1 = arith.addi %0, %arg1 : i32
    %c0_i32 = arith.constant 0 : i32
    %c0_i32_0 = arith.constant 0 : i32
    return %1, %c0_i32 : i32, i32
  }
  func.func @transform_2(%arg0: i32, %arg1: i32) -> (i32, i32) {
    %c0_i32 = arith.constant 0 : i32
    %c0_i32_0 = arith.constant 0 : i32
    return %arg0, %c0_i32 : i32, i32
  }
}

</mosaic_0001>

<llo_original>
// kernel: tpu_custom_call.1
$region0: #{tpu_custom_call.1}
  #allocation0 [shape = 'u32[]', space=smem, size = 0x4, offset = 0x4, fixed_abs, tag = 'smem constant byte address 0x4 - core index']
  #allocation1 [shape = 'u32[144,128]{1,0:T(1,128)}', space=vmem, size = 0x12000, scoped, tag = 'internal scratch']
  %s0 = inlined_call_operand.hbm [shape: f32[16,128], index: 0, kind: input, shape index: {}]
  %s1 = inlined_call_operand.hbm [shape: f32[16,128], index: 1, kind: input, shape index: {}]
  %s2 = inlined_call_operand.hbm [shape: f32[8,128], index: 2, kind: output, shape index: {}]
  %s3 = sld [smem:[#allocation0]]
  $region38: #{tpu_custom_call.1} parent=0
    _
  %s5 = ssub.s32 1, %s3
  %s6 = scalar_select 0, %s5, %s3
  $region1: #{tpu_custom_call.1} parent=0
    #allocation2 [shape = 'u8[8192]{0}', space=vmem, size = 0x2000, scoped, tag = 'input window, operand 0, single buffered']
    #allocation3 [shape = 's32[1]{0}', space=sflag, size = 0x4, scoped, tag = 'scoped memory for tpu_custom_call.1']
    #allocation4 [shape = 's32[1]{0}', space=sflag, size = 0x4, scoped, tag = 'scoped memory for tpu_custom_call.1']
    #allocation5 [shape = 'u8[8192]{0}', space=vmem, size = 0x2000, scoped, tag = 'input window, operand 1, single buffered']
    #allocation6 [shape = 's32[1]{0}', space=sflag, size = 0x4, scoped, tag = 'scoped memory for tpu_custom_call.1']
    #allocation7 [shape = 'u8[4096]{0}', space=vmem, size = 0x1000, scoped, tag = 'output window, operand 0, single buffered']
    %7 = vsyncpa [#allocation3], 0
    %8 = vsyncpa [#allocation6], 0
    %9 = vsyncpa [#allocation4], 0
    // Predicated region
    $region2: #{tpu_custom_call.1} parent=1 // pred_check
      _
    $region3: #{tpu_custom_call.1} parent=1 // pred_check_branch
      %11 = sbr.rel (0) target = $region5
    $region4: #{tpu_custom_call.1} parent=1 // pred_region
      %s12 = sadd.s32 0, 0
      %s13 = smul.u32 2, %s12
      %s15 = ssub.s32 256, 256
      %16 = vsyncadd [#allocation3], %s15
      %s17 = smul.addr %s13, 128
      %s18 = scalar_lea.hbm %s0, %s17
      %s19 = sshll.u32 [#allocation2], 4
      %s20 = int_to_ptr.vmem [resolvable:$true] %s19
      %25 = dma.hbm_to_vmem [thread:$0]  %s18, 256, %s20, [#allocation3], 128, 128, 8
    $region5: #{tpu_custom_call.1} parent=1 // pred_fallthru
      _
    // Predicated region
    $region6: #{tpu_custom_call.1} parent=1 // pred_check
      _
    $region7: #{tpu_custom_call.1} parent=1 // pred_check_branch
      %27 = sbr.rel (0) target = $region9
    $region8: #{tpu_custom_call.1} parent=1 // pred_region
      %s28 = sadd.s32 0, 0
      %s29 = smul.u32 2, %s28
      %s31 = ssub.s32 256, 256
      %32 = vsyncadd [#allocation6], %s31
      %s33 = smul.addr %s29, 128
      %s34 = scalar_lea.hbm %s1, %s33
      %s35 = sshll.u32 [#allocation5], 4
      %s36 = int_to_ptr.vmem [resolvable:$true] %s35
      %41 = dma.hbm_to_vmem [thread:$0]  %s34, 256, %s36, [#allocation6], 128, 128, 8
    $region9: #{tpu_custom_call.1} parent=1 // pred_fallthru
      _
    // Predicated region
    $region10: #{tpu_custom_call.1} parent=1 // pred_check
      _
    $region11: #{tpu_custom_call.1} parent=1 // pred_check_branch
      %43 = sbr.rel (0) target = $region13
    $region12: #{tpu_custom_call.1} parent=1 // pred_region
      %44 = dma.done [#allocation3], 256
    $region13: #{tpu_custom_call.1} parent=1 // pred_fallthru
      _
    // Predicated region
    $region14: #{tpu_custom_call.1} parent=1 // pred_check
      _
    $region15: #{tpu_custom_call.1} parent=1 // pred_check_branch
      %46 = sbr.rel (0) target = $region17
    $region16: #{tpu_custom_call.1} parent=1 // pred_region
      %47 = dma.done [#allocation6], 256
    $region17: #{tpu_custom_call.1} parent=1 // pred_fallthru
      _
    %s48 = sadd.s32 0, 0
    %s49 = smul.u32 2, %s48
    %s50 = sadd.s32 0, 0
    %s51 = smul.u32 2, %s50
    %p52 = scmp.eq.s32.totalorder 0, 0
    // Predicated region
    $region18: #{tpu_custom_call.1} parent=1 // pred_check
      %p53 = pneg %p52
    $region19: #{tpu_custom_call.1} parent=1 // pred_check_branch
      %55 = sbr.rel (%p53) target = $region21
    $region20: #{tpu_custom_call.1} parent=1 // pred_region
      %56 = vst [vmem:[#allocation7] sm:$0xff] 0.0
    $region21: #{tpu_custom_call.1} parent=1 // pred_fallthru
      _
    %s57 = sadd.s32 0, 0
    %s58 = smul.u32 %s57, 16
    %s59 = sadd.s32 %s58, 16
    %p60 = scmp.gt.s32.totalorder %s59, 16
    // Predicated region
    $region22: #{tpu_custom_call.1} parent=1 // pred_check
      %p61 = pneg %p60
    $region23: #{tpu_custom_call.1} parent=1 // pred_check_branch
      %63 = sbr.rel (%p61) target = $region25
    $region24: #{tpu_custom_call.1} parent=1 // pred_region
      %v64 = vld [vmem:[#allocation2] sm:$0xff]
      %v65 = vld [vmem:[#allocation2 + $0x8] sm:$0xff]
      %v66 = vld [vmem:[#allocation5] sm:$0xff]
      %v67 = vld [vmem:[#allocation5 + $0x8] sm:$0xff]
      %v68 = vxor.u32 %v64, 2147483648
      %v69 = vxor.u32 %v65, 2147483648
      %v70 = vmul.f32 %v68, 1.442695
      %v71 = vpow.pop %v70
      %v72 = vmul.f32 %v69, 1.442695
      %v73 = vpow.pop %v72
      %v74 = vadd.f32 %v71, 1.0
      %v75 = vadd.f32 %v73, 1.0
      %v76 = vrcp.pop %v74
      %v77 = vmul.f32 1.0, %v76
      %v78 = vrcp.pop %v75
      %v79 = vmul.f32 1.0, %v78
      %v80 = vlaneseq
      %v81 = vshrl.u32 %v80, 7
      %v82 = vadd.s32 %v81, 8
      %v83 = vstv %s58
      %v84 = vadd.s32 %v81, %v83
      %v85 = vadd.s32 %v82, %v83
      %vm86 = vcmp.lt.s32.totalorder %v84, 16
      %vm87 = vcmp.lt.s32.totalorder %v85, 16
      %v88 = vsel %vm86, %v77, 0.0
      %v89 = vsel %vm87, %v79, 0.0
      %v90 = vsel %vm86, %v66, 0.0
      %v91 = vsel %vm87, %v67, 0.0
      %v92 = vmul.f32 %v88, %v90
      %v93 = vmul.f32 %v89, %v91
      %v94 = vmul.f32 %v88, %v88
      %v95 = vmul.f32 %v89, %v89
      %v96 = vmul.f32 %v94, 2.1356923e-06
      %v97 = vmul.f32 %v95, 2.1356923e-06
      %v98 = vadd.f32 %v96, -2.6351687e-05
      %v99 = vadd.f32 %v97, -2.6351687e-05
      %v100 = vmul.f32 %v98, %v94
      %v101 = vmul.f32 %v99, %v95
      %v102 = vadd.f32 %v100, 0.00034722223
      %v103 = vadd.f32 %v101, 0.00034722223
      %v104 = vmul.f32 %v102, %v94
      %v105 = vmul.f32 %v103, %v95
      %v106 = vadd.f32 %v104, -0.0052083335
      %v107 = vadd.f32 %v105, -0.0052083335
      %v108 = vmul.f32 %v106, %v94
      %v109 = vmul.f32 %v107, %v95
      %v110 = vadd.f32 %v108, 0.125
      %v111 = vadd.f32 %v109, 0.125
      %v112 = vmul.f32 %v110, %v94
      %v113 = vmul.f32 %v111, %v95
      %v114 = vmul.f32 %v88, 0.5
      %v115 = vmul.f32 %v89, 0.5
      %v116 = vsub.f32 0.6931472, %v114
      %v117 = vsub.f32 0.6931472, %v115
      %v118 = vadd.f32 %v116, %v112
      %v119 = vadd.f32 %v117, %v113
      %v120 = vsel %vm86, %v118, 0.0
      %v121 = vsel %vm87, %v119, 0.0
      %v122 = vld [vmem:[#allocation7] sm:$0x1]
      %v123 = vadd.f32 %v92, %v93
      %v124 = vrot.slane %v123, 4
      %v125 = vadd.f32 %v123, %v124
      %v126 = vrot.slane %v125, 2
      %v127 = vadd.f32 %v125, %v126
      %v128 = vrot.slane %v127, 1
      %v129 = vadd.f32 %v127, %v128
      %v130 = vadd.f32 %v122, %v129
      %131 = vst [vmem:[#allocation7] sm:$0x1] %v130
      %v132 = vld [vmem:[#allocation7 + $0x1] sm:$0x1]
      %v133 = vadd.f32 %v88, %v89
      %v134 = vrot.slane %v133, 4
      %v135 = vadd.f32 %v133, %v134
      %v136 = vrot.slane %v135, 2
      %v137 = vadd.f32 %v135, %v136
      %v138 = vrot.slane %v137, 1
      %v139 = vadd.f32 %v137, %v138
      %v140 = vadd.f32 %v132, %v139
      %141 = vst [vmem:[#allocation7 + $0x1] sm:$0x1] %v140
      %v142 = vld [vmem:[#allocation7 + $0x2] sm:$0x1]
      %v143 = vadd.f32 %v90, %v91
      %v144 = vrot.slane %v143, 4
      %v145 = vadd.f32 %v143, %v144
      %v146 = vrot.slane %v145, 2
      %v147 = vadd.f32 %v145, %v146
      %v148 = vrot.slane %v147, 1
      %v149 = vadd.f32 %v147, %v148
      %v150 = vadd.f32 %v142, %v149
      %151 = vst [vmem:[#allocation7 + $0x2] sm:$0x1] %v150
      %v152 = vld [vmem:[#allocation7 + $0x3] sm:$0x1]
      %v153 = vadd.f32 %v120, %v121
      %v154 = vrot.slane %v153, 4
      %v155 = vadd.f32 %v153, %v154
      %v156 = vrot.slane %v155, 2
      %v157 = vadd.f32 %v155, %v156
      %v158 = vrot.slane %v157, 1
      %v159 = vadd.f32 %v157, %v158
      %v160 = vadd.f32 %v152, %v159
      %161 = vst [vmem:[#allocation7 + $0x3] sm:$0x1] %v160
    $region25: #{tpu_custom_call.1} parent=1 // pred_fallthru
      _
    %p162 = scmp.le.s32.totalorder %s59, 16
    // Predicated region
    $region26: #{tpu_custom_call.1} parent=1 // pred_check
      %p163 = pneg %p162
    $region27: #{tpu_custom_call.1} parent=1 // pred_check_branch
      %165 = sbr.rel (%p163) target = $region29
    $region28: #{tpu_custom_call.1} parent=1 // pred_region
      %v166 = vld [vmem:[#allocation2] sm:$0xff]
      %v167 = vld [vmem:[#allocation2 + $0x8] sm:$0xff]
      %v168 = vld [vmem:[#allocation5] sm:$0xff]
      %v169 = vld [vmem:[#allocation5 + $0x8] sm:$0xff]
      %v170 = vxor.u32 %v166, 2147483648
      %v171 = vxor.u32 %v167, 2147483648
      %v172 = vmul.f32 %v170, 1.442695
      %v173 = vpow.pop %v172
      %v174 = vmul.f32 %v171, 1.442695
      %v175 = vpow.pop %v174
      %v176 = vadd.f32 %v173, 1.0
      %v177 = vadd.f32 %v175, 1.0
      %v178 = vrcp.pop %v176
      %v179 = vmul.f32 1.0, %v178
      %v180 = vrcp.pop %v177
      %v181 = vmul.f32 1.0, %v180
      %v182 = vmul.f32 %v179, %v168
      %v183 = vmul.f32 %v181, %v169
      %v184 = vmul.f32 %v179, %v179
      %v185 = vmul.f32 %v181, %v181
      %v186 = vmul.f32 %v184, 2.1356923e-06
      %v187 = vmul.f32 %v185, 2.1356923e-06
      %v188 = vadd.f32 %v186, -2.6351687e-05
      %v189 = vadd.f32 %v187, -2.6351687e-05
      %v190 = vmul.f32 %v188, %v184
      %v191 = vmul.f32 %v189, %v185
      %v192 = vadd.f32 %v190, 0.00034722223
      %v193 = vadd.f32 %v191, 0.00034722223
      %v194 = vmul.f32 %v192, %v184
      %v195 = vmul.f32 %v193, %v185
      %v196 = vadd.f32 %v194, -0.0052083335
      %v197 = vadd.f32 %v195, -0.0052083335
      %v198 = vmul.f32 %v196, %v184
      %v199 = vmul.f32 %v197, %v185
      %v200 = vadd.f32 %v198, 0.125
      %v201 = vadd.f32 %v199, 0.125
      %v202 = vmul.f32 %v200, %v184
      %v203 = vmul.f32 %v201, %v185
      %v204 = vmul.f32 %v179, 0.5
      %v205 = vmul.f32 %v181, 0.5
      %v206 = vsub.f32 0.6931472, %v204
      %v207 = vsub.f32 0.6931472, %v205
      %v208 = vadd.f32 %v206, %v202
      %v209 = vadd.f32 %v207, %v203
      %v210 = vld [vmem:[#allocation7] sm:$0x1]
      %v211 = vadd.f32 %v182, %v183
      %v212 = vrot.slane %v211, 4
      %v213 = vadd.f32 %v211, %v212
      %v214 = vrot.slane %v213, 2
      %v215 = vadd.f32 %v213, %v214
      %v216 = vrot.slane %v215, 1
      %v217 = vadd.f32 %v215, %v216
      %v218 = vadd.f32 %v210, %v217
      %219 = vst [vmem:[#allocation7] sm:$0x1] %v218
      %v220 = vld [vmem:[#allocation7 + $0x1] sm:$0x1]
      %v221 = vadd.f32 %v179, %v181
      %v222 = vrot.slane %v221, 4
      %v223 = vadd.f32 %v221, %v222
      %v224 = vrot.slane %v223, 2
      %v225 = vadd.f32 %v223, %v224
      %v226 = vrot.slane %v225, 1
      %v227 = vadd.f32 %v225, %v226
      %v228 = vadd.f32 %v220, %v227
      %229 = vst [vmem:[#allocation7 + $0x1] sm:$0x1] %v228
      %v230 = vld [vmem:[#allocation7 + $0x2] sm:$0x1]
      %v231 = vadd.f32 %v168, %v169
      %v232 = vrot.slane %v231, 4
      %v233 = vadd.f32 %v231, %v232
      %v234 = vrot.slane %v233, 2
      %v235 = vadd.f32 %v233, %v234
      %v236 = vrot.slane %v235, 1
      %v237 = vadd.f32 %v235, %v236
      %v238 = vadd.f32 %v230, %v237
      %239 = vst [vmem:[#allocation7 + $0x2] sm:$0x1] %v238
      %v240 = vld [vmem:[#allocation7 + $0x3] sm:$0x1]
      %v241 = vadd.f32 %v208, %v209
      %v242 = vrot.slane %v241, 4
      %v243 = vadd.f32 %v241, %v242
      %v244 = vrot.slane %v243, 2
      %v245 = vadd.f32 %v243, %v244
      %v246 = vrot.slane %v245, 1
      %v247 = vadd.f32 %v245, %v246
      %v248 = vadd.f32 %v240, %v247
      %249 = vst [vmem:[#allocation7 + $0x3] sm:$0x1] %v248
    $region29: #{tpu_custom_call.1} parent=1 // pred_fallthru
      _
    // Predicated region
    $region30: #{tpu_custom_call.1} parent=1 // pred_check
      _
    $region31: #{tpu_custom_call.1} parent=1 // pred_check_branch
      %251 = sbr.rel (0) target = $region33
    $region32: #{tpu_custom_call.1} parent=1 // pred_region
      %s253 = ssub.s32 128, 128
      %254 = vsyncadd [#allocation4], %s253
      %s256 = sshll.u32 [#allocation7], 4
      %s257 = int_to_ptr.vmem [resolvable:$true] %s256
      %259 = dma.vmem_to_hbm [thread:$0]  %s257, 128, %s2, [#allocation4]
    $region33: #{tpu_custom_call.1} parent=1 // pred_fallthru
      _
    // Predicated region
    $region34: #{tpu_custom_call.1} parent=1 // pred_check
      _
    $region35: #{tpu_custom_call.1} parent=1 // pred_check_branch
      %261 = sbr.rel (0) target = $region37
    $region36: #{tpu_custom_call.1} parent=1 // pred_region
      %262 = dma.done [#allocation4], 128
    $region37: #{tpu_custom_call.1} parent=1 // pred_fallthru
      _
    %263 = vsyncpa [#allocation3], 1
    %264 = vsyncpa [#allocation6], 1
    %265 = vsyncpa [#allocation4], 1

</llo_original>
